<compile_context>
chip_gen: v5e
topology: v5e:2x2
jax: 0.10.0
libtpu: 0.0.40
codegen_flags: <defaults>
</compile_context>

<pallas_src>
import functools

import jax
import jax.numpy as jnp
from jax.experimental import pallas as pl
from jax.experimental.pallas import tpu as pltpu


def _round_up(v, m):
    return (v + m - 1) // m * m


# -----------------------------------------------------------------------------
# Fused avg-pool + linear kernel
# -----------------------------------------------------------------------------
def _pool_fc_kernel(x_ref, w_ref, b_ref, o_ref, acc_ref, *, inv_hw):
    """One (batch_tile, channel_tile) grid step.

    x_ref:   (tb, tc, HWp)  input activations (NCHW flattened over H*W)
    w_ref:   (tc, Np)       fc weight slice (already transposed to [C, N])
    b_ref:   (1, Np)        fc bias
    o_ref:   (tb, Np)       output logits tile (resident across channel axis)
    acc_ref: (tb, Np) f32   VMEM accumulator scratch
    """
    c = pl.program_id(1)

    @pl.when(c == 0)
    def _():
        acc_ref[...] = jnp.zeros_like(acc_ref)

    # Global average pool over the spatial (lane) axis.  Padded spatial
    # columns are zero so the sum is exact; scale by the true 1/(H*W).
    pooled = jnp.sum(x_ref[...], axis=-1) * inv_hw          # (tb, tc)

    # Partial FC contribution for this channel tile (MXU, f32 accumulate).
    acc_ref[...] += jnp.dot(pooled, w_ref[...],
                            preferred_element_type=jnp.float32)

    @pl.when(c == pl.num_programs(1) - 1)
    def _():
        o_ref[...] = (acc_ref[...] + b_ref[...]).astype(o_ref.dtype)


def covid_head_forward(x, fc_weight, fc_bias):
    """Forward pass of COVIDClassificationHead.

    x:         [B, C, H, W]  (NCHW, like the PyTorch module)
    fc_weight: [num_classes, C]  (PyTorch nn.Linear layout)
    fc_bias:   [num_classes]
    returns:   [B, num_classes]
    """
    x = x.astype(jnp.float32)
    B, C, H, W = x.shape
    N = fc_weight.shape[0]
    HW = H * W

    # ---- tile sizes / padded extents --------------------------------------
    tb = 128 if B >= 128 else _round_up(B, 8)       # batch tile (sublane mult)
    Bp = _round_up(B, tb)
    tc = 256 if C >= 256 else _round_up(C, 8)       # channel (reduction) tile
    Cp = _round_up(C, tc)
    HWp = _round_up(HW, 128)                        # spatial lane axis
    Np = _round_up(N, 128)                          # output lane axis

    # ---- operand prep (pad only misaligned dims; zeros are semantics-safe) -
    x3 = x.reshape(B, C, HW)
    if (Bp, Cp, HWp) != (B, C, HW):
        x3 = jnp.pad(x3, ((0, Bp - B), (0, Cp - C), (0, HWp - HW)))

    w_t = fc_weight.T.astype(jnp.float32)           # [C, N]
    if (Cp, Np) != (C, N):
        w_t = jnp.pad(w_t, ((0, Cp - C), (0, Np - N)))

    b2d = fc_bias.astype(jnp.float32).reshape(1, N)
    if Np != N:
        b2d = jnp.pad(b2d, ((0, 0), (0, Np - N)))

    grid = (Bp // tb, Cp // tc)

    out = pl.pallas_call(
        functools.partial(_pool_fc_kernel, inv_hw=1.0 / float(HW)),
        out_shape=jax.ShapeDtypeStruct((Bp, Np), jnp.float32),
        grid_spec=pltpu.PrefetchScalarGridSpec(
            num_scalar_prefetch=0,
            grid=grid,
            in_specs=[
                pl.BlockSpec((tb, tc, HWp), lambda bi, ci: (bi, ci, 0)),
                pl.BlockSpec((tc, Np), lambda bi, ci: (ci, 0)),
                pl.BlockSpec((1, Np), lambda bi, ci: (0, 0)),
            ],
            out_specs=pl.BlockSpec((tb, Np), lambda bi, ci: (bi, 0)),
            scratch_shapes=[pltpu.VMEM((tb, Np), jnp.float32)],
        ),
        compiler_params=pltpu.CompilerParams(
            dimension_semantics=("parallel", "arbitrary")),
    )(x3, w_t, b2d)

    return out[:B, :N]


if __name__ == "__main__":
    B, C, H, W = 2, 32, 16, 16     # input_size = C = 32
    NUM_CLASSES = 8

    key = jax.random.PRNGKey(0)
    kx, kw, kb = jax.random.split(key, 3)
    x = jax.random.normal(kx, (B, C, H, W), jnp.float32)
    fc_w = jax.random.normal(kw, (NUM_CLASSES, C), jnp.float32) / jnp.sqrt(
        jnp.float32(C))
    fc_b = 0.1 * jax.random.normal(kb, (NUM_CLASSES,), jnp.float32)

    fwd = jax.jit(covid_head_forward)
    y = jax.block_until_ready(fwd(x, fc_w, fc_b))

    # Reference: AdaptiveAvgPool2d(1) -> flatten -> Linear
    ref = jnp.mean(x, axis=(2, 3)) @ fc_w.T + fc_b

    assert y.shape == (B, NUM_CLASSES), y.shape
    assert bool(jnp.all(jnp.isfinite(y)))
    assert bool(jnp.allclose(y, ref, atol=1e-4, rtol=1e-4))
    print("KERNEL_OK")
</pallas_src>

<mosaic_0001>
module attributes {stable_mosaic.version = 11 : i64} {
  func.func @_pool_fc_kernel(%arg0: i32, %arg1: i32, %arg2: memref<8x32x256xf32, #tpu.memory_space<vmem>>, %arg3: memref<32x128xf32, #tpu.memory_space<vmem>>, %arg4: memref<1x128xf32, #tpu.memory_space<vmem>>, %arg5: memref<8x128xf32, #tpu.memory_space<vmem>>, %arg6: memref<8x128xf32, #tpu.memory_space<vmem>>) attributes {dimension_semantics = [#tpu.dimension_semantics<parallel>, #tpu.dimension_semantics<arbitrary>], iteration_bounds = array<i64: 1, 1>, scalar_prefetch = 0 : i64, scratch_operands = 1 : i64, tpu.core_type = #tpu.core_type<tc>, window_params = [{transform_indices = @transform_0, window_bounds = array<i64: 8, 32, 256>}, {transform_indices = @transform_1, window_bounds = array<i64: 32, 128>}, {pipeline_mode = #tpu.pipeline_mode<synchronous>, transform_indices = @transform_2, window_bounds = array<i64: 1, 128>}, {transform_indices = @transform_3, window_bounds = array<i64: 8, 128>}]} {
    %c0_i32 = arith.constant 0 : i32
    %0 = arith.cmpi eq, %arg1, %c0_i32 : i32
    %1 = arith.extui %0 : i1 to i32
    %c0_i32_0 = arith.constant 0 : i32
    %2 = arith.cmpi ne, %1, %c0_i32_0 : i32
    scf.if %2 {
      %cst_13 = arith.constant 0.000000e+00 : f32
      %15 = vector.broadcast %cst_13 : f32 to vector<8x128xf32>
      %c0_14 = arith.constant 0 : index
      %c0_15 = arith.constant 0 : index
      %16 = vector.load %arg6[%c0_14, %c0_15] : memref<8x128xf32, #tpu.memory_space<vmem>>, vector<8x128xf32>
      tpu.vector_store %arg6[%c0_14, %c0_15], %15 {strides = array<i32>} : memref<8x128xf32, #tpu.memory_space<vmem>>, vector<8x128xf32>,
    } else {
    }
    %c0 = arith.constant 0 : index
    %c0_1 = arith.constant 0 : index
    %c0_2 = arith.constant 0 : index
    %3 = vector.load %arg2[%c0, %c0_1, %c0_2] : memref<8x32x256xf32, #tpu.memory_space<vmem>>, vector<8x32x256xf32>
    %cst = arith.constant dense<0.000000e+00> : vector<8x32xf32>
    %4 = vector.multi_reduction <add>, %3, %cst [2] : vector<8x32x256xf32> to vector<8x32xf32>
    %cst_3 = arith.constant 3.906250e-03 : f32
    %5 = vector.broadcast %cst_3 : f32 to vector<8x32xf32>
    %6 = arith.mulf %4, %5 : vector<8x32xf32>
    %c0_4 = arith.constant 0 : index
    %c0_5 = arith.constant 0 : index
    %7 = vector.load %arg6[%c0_4, %c0_5] : memref<8x128xf32, #tpu.memory_space<vmem>>, vector<8x128xf32>
    %c0_6 = arith.constant 0 : index
    %c0_7 = arith.constant 0 : index
    %8 = vector.load %arg3[%c0_6, %c0_7] : memref<32x128xf32, #tpu.memory_space<vmem>>, vector<32x128xf32>
    %cst_8 = arith.constant dense<0.000000e+00> : vector<8x128xf32>
    %9 = tpu.matmul %6, %8, %cst_8 {dimension_numbers = #tpu.dot_dimension_numbers<[1], [0], [0], [1], [0, 0, 1, 1], [], []>} : vector<8x32xf32>, vector<32x128xf32>, vector<8x128xf32> -> vector<8x128xf32>
    %10 = arith.addf %7, %9 : vector<8x128xf32>
    %c0_9 = arith.constant 0 : index
    %c0_10 = arith.constant 0 : index
    %11 = vector.load %arg6[%c0_9, %c0_10] : memref<8x128xf32, #tpu.memory_space<vmem>>, vector<8x128xf32>
    tpu.vector_store %arg6[%c0_9, %c0_10], %10 {strides = array<i32>} : memref<8x128xf32, #tpu.memory_space<vmem>>, vector<8x128xf32>,
    %c0_i32_11 = arith.constant 0 : i32
    %12 = arith.cmpi eq, %arg1, %c0_i32_11 : i32
    %13 = arith.extui %12 : i1 to i32
    %c0_i32_12 = arith.constant 0 : i32
    %14 = arith.cmpi ne, %13, %c0_i32_12 : i32
    scf.if %14 {
      %c0_13 = arith.constant 0 : index
      %c0_14 = arith.constant 0 : index
      %15 = vector.load %arg6[%c0_13, %c0_14] : memref<8x128xf32, #tpu.memory_space<vmem>>, vector<8x128xf32>
      %c0_15 = arith.constant 0 : index
      %c0_16 = arith.constant 0 : index
      %16 = vector.load %arg4[%c0_15, %c0_16] : memref<1x128xf32, #tpu.memory_space<vmem>>, vector<1x128xf32>
      %17 = vector.broadcast %16 : vector<1x128xf32> to vector<8x128xf32>
      %18 = arith.addf %15, %17 : vector<8x128xf32>
      %c0_17 = arith.constant 0 : index
      %c0_18 = arith.constant 0 : index
      %19 = vector.load %arg5[%c0_17, %c0_18] : memref<8x128xf32, #tpu.memory_space<vmem>>, vector<8x128xf32>
      tpu.vector_store %arg5[%c0_17, %c0_18], %18 {strides = array<i32>} : memref<8x128xf32, #tpu.memory_space<vmem>>, vector<8x128xf32>,
    } else {
    }
    return
  }
  func.func @transform_0(%arg0: i32, %arg1: i32) -> (i32, i32, i32) {
    %c0_i32 = arith.constant 0 : i32
    %c0_i32_0 = arith.constant 0 : i32
    return %arg0, %arg1, %c0_i32 : i32, i32, i32
  }
  func.func @transform_1(%arg0: i32, %arg1: i32) -> (i32, i32) {
    %c0_i32 = arith.constant 0 : i32
    %c0_i32_0 = arith.constant 0 : i32
    return %arg1, %c0_i32 : i32, i32
  }
  func.func @transform_2(%arg0: i32, %arg1: i32) -> (i32, i32) {
    %c0_i32 = arith.constant 0 : i32
    %c0_i32_0 = arith.constant 0 : i32
    %c0_i32_1 = arith.constant 0 : i32
    return %c0_i32, %c0_i32_0 : i32, i32
  }
  func.func @transform_3(%arg0: i32, %arg1: i32) -> (i32, i32) {
    %c0_i32 = arith.constant 0 : i32
    %c0_i32_0 = arith.constant 0 : i32
    return %arg0, %c0_i32 : i32, i32
  }
}

</mosaic_0001>

<llo_original>
// kernel: covid_head_forward.1
$region0: #{covid_head_forward.1}
  #allocation0 [shape = 'u32[]', space=smem, size = 0x4, offset = 0x4, fixed_abs, tag = 'smem constant byte address 0x4 - core index']
  #allocation1 [shape = 'u32[72,128]{1,0:T(1,128)}', space=vmem, size = 0x9000, scoped, tag = 'internal scratch']
  #allocation2 [shape = 'f32[8,128]{1,0:T(8,128)}', space=vmem, size = 0x1000, scoped, tag = 'scratch operand']
  %s0 = inlined_call_operand.vmem [shape: f32[8,32,256], index: 0, kind: input, shape index: {}]
  %s1 = inlined_call_operand.vmem [shape: f32[32,128], index: 1, kind: input, shape index: {}]
  %s2 = inlined_call_operand.vmem [shape: f32[1,128], index: 2, kind: input, shape index: {}]
  %s3 = inlined_call_operand.vmem [shape: f32[8,128], index: 3, kind: output, shape index: {}]
  %s4 = sld [smem:[#allocation0]]
  $region30: #{covid_head_forward.1} parent=0
    _
  %s6 = ssub.s32 1, %s4
  %s7 = scalar_select 0, %s6, %s4
  // Predicated region
  $region2: #{covid_head_forward.1} parent=0 // pred_check
    _
  $region3: #{covid_head_forward.1} parent=0 // pred_check_branch
    %9 = sbr.rel (0) target = $region5
  $region4: #{covid_head_forward.1} parent=0 // pred_region
    _
  $region5: #{covid_head_forward.1} parent=0 // pred_fallthru
    _
  // Predicated region
  $region6: #{covid_head_forward.1} parent=0 // pred_check
    _
  $region7: #{covid_head_forward.1} parent=0 // pred_check_branch
    %11 = sbr.rel (0) target = $region9
  $region8: #{covid_head_forward.1} parent=0 // pred_region
    _
  $region9: #{covid_head_forward.1} parent=0 // pred_fallthru
    _
  // Predicated region
  $region10: #{covid_head_forward.1} parent=0 // pred_check
    _
  $region11: #{covid_head_forward.1} parent=0 // pred_check_branch
    %13 = sbr.rel (0) target = $region13
  $region12: #{covid_head_forward.1} parent=0 // pred_region
    _
  $region13: #{covid_head_forward.1} parent=0 // pred_fallthru
    _
  %p14 = scmp.eq.s32.totalorder 0, 0
  // Predicated region
  $region14: #{covid_head_forward.1} parent=0 // pred_check
    %p15 = pneg %p14
  $region15: #{covid_head_forward.1} parent=0 // pred_check_branch
    %17 = sbr.rel (%p15) target = $region17
  $region16: #{covid_head_forward.1} parent=0 // pred_region
    %18 = vst [vmem:[#allocation2] sm:$0xff] 0.0
  $region17: #{covid_head_forward.1} parent=0 // pred_fallthru
    _
  %v19 = vld [vmem:[%s0] sm:$0xff]
  %v20 = vld [vmem:[%s0 + $0x8] sm:$0xff]
  %v21 = vld [vmem:[%s0 + $0x10] sm:$0xff]
  %v22 = vld [vmem:[%s0 + $0x18] sm:$0xff]
  %v23 = vld [vmem:[%s0 + $0x20] sm:$0xff]
  %v24 = vld [vmem:[%s0 + $0x28] sm:$0xff]
  %v25 = vld [vmem:[%s0 + $0x30] sm:$0xff]
  %v26 = vld [vmem:[%s0 + $0x38] sm:$0xff]
  %v27 = vld [vmem:[%s0 + $0x40] sm:$0xff]
  %v28 = vld [vmem:[%s0 + $0x48] sm:$0xff]
  %v29 = vld [vmem:[%s0 + $0x50] sm:$0xff]
  %v30 = vld [vmem:[%s0 + $0x58] sm:$0xff]
  %v31 = vld [vmem:[%s0 + $0x60] sm:$0xff]
  %v32 = vld [vmem:[%s0 + $0x68] sm:$0xff]
  %v33 = vld [vmem:[%s0 + $0x70] sm:$0xff]
  %v34 = vld [vmem:[%s0 + $0x78] sm:$0xff]
  %v35 = vld [vmem:[%s0 + $0x80] sm:$0xff]
  %v36 = vld [vmem:[%s0 + $0x88] sm:$0xff]
  %v37 = vld [vmem:[%s0 + $0x90] sm:$0xff]
  %v38 = vld [vmem:[%s0 + $0x98] sm:$0xff]
  %v39 = vld [vmem:[%s0 + $0xa0] sm:$0xff]
  %v40 = vld [vmem:[%s0 + $0xa8] sm:$0xff]
  %v41 = vld [vmem:[%s0 + $0xb0] sm:$0xff]
  %v42 = vld [vmem:[%s0 + $0xb8] sm:$0xff]
  %v43 = vld [vmem:[%s0 + $0xc0] sm:$0xff]
  %v44 = vld [vmem:[%s0 + $0xc8] sm:$0xff]
  %v45 = vld [vmem:[%s0 + $0xd0] sm:$0xff]
  %v46 = vld [vmem:[%s0 + $0xd8] sm:$0xff]
  %v47 = vld [vmem:[%s0 + $0xe0] sm:$0xff]
  %v48 = vld [vmem:[%s0 + $0xe8] sm:$0xff]
  %v49 = vld [vmem:[%s0 + $0xf0] sm:$0xff]
  %v50 = vld [vmem:[%s0 + $0xf8] sm:$0xff]
  %v51 = vld [vmem:[%s0 + $0x100] sm:$0xff]
  %v52 = vld [vmem:[%s0 + $0x108] sm:$0xff]
  %v53 = vld [vmem:[%s0 + $0x110] sm:$0xff]
  %v54 = vld [vmem:[%s0 + $0x118] sm:$0xff]
  %v55 = vld [vmem:[%s0 + $0x120] sm:$0xff]
  %v56 = vld [vmem:[%s0 + $0x128] sm:$0xff]
  %v57 = vld [vmem:[%s0 + $0x130] sm:$0xff]
  %v58 = vld [vmem:[%s0 + $0x138] sm:$0xff]
  %v59 = vld [vmem:[%s0 + $0x140] sm:$0xff]
  %v60 = vld [vmem:[%s0 + $0x148] sm:$0xff]
  %v61 = vld [vmem:[%s0 + $0x150] sm:$0xff]
  %v62 = vld [vmem:[%s0 + $0x158] sm:$0xff]
  %v63 = vld [vmem:[%s0 + $0x160] sm:$0xff]
  %v64 = vld [vmem:[%s0 + $0x168] sm:$0xff]
  %v65 = vld [vmem:[%s0 + $0x170] sm:$0xff]
  %v66 = vld [vmem:[%s0 + $0x178] sm:$0xff]
  %v67 = vld [vmem:[%s0 + $0x180] sm:$0xff]
  %v68 = vld [vmem:[%s0 + $0x188] sm:$0xff]
  %v69 = vld [vmem:[%s0 + $0x190] sm:$0xff]
  %v70 = vld [vmem:[%s0 + $0x198] sm:$0xff]
  %v71 = vld [vmem:[%s0 + $0x1a0] sm:$0xff]
  %v72 = vld [vmem:[%s0 + $0x1a8] sm:$0xff]
  %v73 = vld [vmem:[%s0 + $0x1b0] sm:$0xff]
  %v74 = vld [vmem:[%s0 + $0x1b8] sm:$0xff]
  %v75 = vld [vmem:[%s0 + $0x1c0] sm:$0xff]
  %v76 = vld [vmem:[%s0 + $0x1c8] sm:$0xff]
  %v77 = vld [vmem:[%s0 + $0x1d0] sm:$0xff]
  %v78 = vld [vmem:[%s0 + $0x1d8] sm:$0xff]
  %v79 = vld [vmem:[%s0 + $0x1e0] sm:$0xff]
  %v80 = vld [vmem:[%s0 + $0x1e8] sm:$0xff]
  %v81 = vld [vmem:[%s0 + $0x1f0] sm:$0xff]
  %v82 = vld [vmem:[%s0 + $0x1f8] sm:$0xff]
  %v83 = vadd.f32 %v19, %v20
  %84 = vadd.xlane.f32.xlu0 %v83
  %v85 = vpop.xlane.xlu0 %84
  %v86 = vadd.f32 %v21, %v22
  %87 = vadd.xlane.f32.xlu0 %v86
  %v88 = vpop.xlane.xlu0 %87
  %v89 = vadd.f32 %v23, %v24
  %90 = vadd.xlane.f32.xlu0 %v89
  %v91 = vpop.xlane.xlu0 %90
  %v92 = vadd.f32 %v25, %v26
  %93 = vadd.xlane.f32.xlu0 %v92
  %v94 = vpop.xlane.xlu0 %93
  %v95 = vadd.f32 %v27, %v28
  %96 = vadd.xlane.f32.xlu0 %v95
  %v97 = vpop.xlane.xlu0 %96
  %v98 = vadd.f32 %v29, %v30
  %99 = vadd.xlane.f32.xlu0 %v98
  %v100 = vpop.xlane.xlu0 %99
  %v101 = vadd.f32 %v31, %v32
  %102 = vadd.xlane.f32.xlu0 %v101
  %v103 = vpop.xlane.xlu0 %102
  %v104 = vadd.f32 %v33, %v34
  %105 = vadd.xlane.f32.xlu0 %v104
  %v106 = vpop.xlane.xlu0 %105
  %v107 = vadd.f32 %v35, %v36
  %108 = vadd.xlane.f32.xlu0 %v107
  %v109 = vpop.xlane.xlu0 %108
  %v110 = vadd.f32 %v37, %v38
  %111 = vadd.xlane.f32.xlu0 %v110
  %v112 = vpop.xlane.xlu0 %111
  %v113 = vadd.f32 %v39, %v40
  %114 = vadd.xlane.f32.xlu0 %v113
  %v115 = vpop.xlane.xlu0 %114
  %v116 = vadd.f32 %v41, %v42
  %117 = vadd.xlane.f32.xlu0 %v116
  %v118 = vpop.xlane.xlu0 %117
  %v119 = vadd.f32 %v43, %v44
  %120 = vadd.xlane.f32.xlu0 %v119
  %v121 = vpop.xlane.xlu0 %120
  %v122 = vadd.f32 %v45, %v46
  %123 = vadd.xlane.f32.xlu0 %v122
  %v124 = vpop.xlane.xlu0 %123
  %v125 = vadd.f32 %v47, %v48
  %126 = vadd.xlane.f32.xlu0 %v125
  %v127 = vpop.xlane.xlu0 %126
  %v128 = vadd.f32 %v49, %v50
  %129 = vadd.xlane.f32.xlu0 %v128
  %v130 = vpop.xlane.xlu0 %129
  %v131 = vadd.f32 %v51, %v52
  %132 = vadd.xlane.f32.xlu0 %v131
  %v133 = vpop.xlane.xlu0 %132
  %v134 = vadd.f32 %v53, %v54
  %135 = vadd.xlane.f32.xlu0 %v134
  %v136 = vpop.xlane.xlu0 %135
  %v137 = vadd.f32 %v55, %v56
  %138 = vadd.xlane.f32.xlu0 %v137
  %v139 = vpop.xlane.xlu0 %138
  %v140 = vadd.f32 %v57, %v58
  %141 = vadd.xlane.f32.xlu0 %v140
  %v142 = vpop.xlane.xlu0 %141
  %v143 = vadd.f32 %v59, %v60
  %144 = vadd.xlane.f32.xlu0 %v143
  %v145 = vpop.xlane.xlu0 %144
  %v146 = vadd.f32 %v61, %v62
  %147 = vadd.xlane.f32.xlu0 %v146
  %v148 = vpop.xlane.xlu0 %147
  %v149 = vadd.f32 %v63, %v64
  %150 = vadd.xlane.f32.xlu0 %v149
  %v151 = vpop.xlane.xlu0 %150
  %v152 = vadd.f32 %v65, %v66
  %153 = vadd.xlane.f32.xlu0 %v152
  %v154 = vpop.xlane.xlu0 %153
  %v155 = vadd.f32 %v67, %v68
  %156 = vadd.xlane.f32.xlu0 %v155
  %v157 = vpop.xlane.xlu0 %156
  %v158 = vadd.f32 %v69, %v70
  %159 = vadd.xlane.f32.xlu0 %v158
  %v160 = vpop.xlane.xlu0 %159
  %v161 = vadd.f32 %v71, %v72
  %162 = vadd.xlane.f32.xlu0 %v161
  %v163 = vpop.xlane.xlu0 %162
  %v164 = vadd.f32 %v73, %v74
  %165 = vadd.xlane.f32.xlu0 %v164
  %v166 = vpop.xlane.xlu0 %165
  %v167 = vadd.f32 %v75, %v76
  %168 = vadd.xlane.f32.xlu0 %v167
  %v169 = vpop.xlane.xlu0 %168
  %v170 = vadd.f32 %v77, %v78
  %171 = vadd.xlane.f32.xlu0 %v170
  %v172 = vpop.xlane.xlu0 %171
  %v173 = vadd.f32 %v79, %v80
  %174 = vadd.xlane.f32.xlu0 %v173
  %v175 = vpop.xlane.xlu0 %174
  %v176 = vadd.f32 %v81, %v82
  %177 = vadd.xlane.f32.xlu0 %v176
  %v178 = vpop.xlane.xlu0 %177
  %v179 = vmul.f32 %v85, 0.00390625
  %v180 = vmul.f32 %v88, 0.00390625
  %v181 = vmul.f32 %v91, 0.00390625
  %v182 = vmul.f32 %v94, 0.00390625
  %v183 = vmul.f32 %v97, 0.00390625
  %v184 = vmul.f32 %v100, 0.00390625
  %v185 = vmul.f32 %v103, 0.00390625
  %v186 = vmul.f32 %v106, 0.00390625
  %v187 = vmul.f32 %v109, 0.00390625
  %v188 = vmul.f32 %v112, 0.00390625
  %v189 = vmul.f32 %v115, 0.00390625
  %v190 = vmul.f32 %v118, 0.00390625
  %v191 = vmul.f32 %v121, 0.00390625
  %v192 = vmul.f32 %v124, 0.00390625
  %v193 = vmul.f32 %v127, 0.00390625
  %v194 = vmul.f32 %v130, 0.00390625
  %v195 = vmul.f32 %v133, 0.00390625
  %v196 = vmul.f32 %v136, 0.00390625
  %v197 = vmul.f32 %v139, 0.00390625
  %v198 = vmul.f32 %v142, 0.00390625
  %v199 = vmul.f32 %v145, 0.00390625
  %v200 = vmul.f32 %v148, 0.00390625
  %v201 = vmul.f32 %v151, 0.00390625
  %v202 = vmul.f32 %v154, 0.00390625
  %v203 = vmul.f32 %v157, 0.00390625
  %v204 = vmul.f32 %v160, 0.00390625
  %v205 = vmul.f32 %v163, 0.00390625
  %v206 = vmul.f32 %v166, 0.00390625
  %v207 = vmul.f32 %v169, 0.00390625
  %v208 = vmul.f32 %v172, 0.00390625
  %v209 = vmul.f32 %v175, 0.00390625
  %v210 = vmul.f32 %v178, 0.00390625
  %v211 = vld [vmem:[#allocation2] sm:$0xff]
  %v212 = vld [vmem:[%s1] sm:$0xff]
  %v213 = vld [vmem:[%s1 + $0x8] sm:$0xff]
  %v214 = vld [vmem:[%s1 + $0x10] sm:$0xff]
  %v215 = vld [vmem:[%s1 + $0x18] sm:$0xff]
  %v248 = vlaneseq
  %v249 = vand.u32 %v248, 127
  %v250 = vperm.slane %v179, %v249
  %v251 = vadd.s32 %v249, 4294967288
  %v252 = vperm.slane %v180, %v251
  %vm253 = vcmask 130112
  %v254 = vsel %vm253, %v252, %v250
  %v255 = vadd.s32 %v249, 4294967280
  %v256 = vperm.slane %v181, %v255
  %vm257 = vcmask 195712
  %v258 = vsel %vm257, %v256, %v254
  %v259 = vadd.s32 %v249, 4294967272
  %v260 = vperm.slane %v182, %v259
  %vm261 = vcmask 261312
  %v262 = vsel %vm261, %v260, %v258
  %v263 = vperm.slane %v183, %v249
  %v264 = vperm.slane %v184, %v251
  %v265 = vsel %vm253, %v264, %v263
  %v266 = vperm.slane %v185, %v255
  %v267 = vsel %vm257, %v266, %v265
  %v268 = vperm.slane %v186, %v259
  %v269 = vsel %vm261, %v268, %v267
  %v270 = vperm.slane %v187, %v249
  %v271 = vperm.slane %v188, %v251
  %v272 = vsel %vm253, %v271, %v270
  %v273 = vperm.slane %v189, %v255
  %v274 = vsel %vm257, %v273, %v272
  %v275 = vperm.slane %v190, %v259
  %v276 = vsel %vm261, %v275, %v274
  %v277 = vperm.slane %v191, %v249
  %v278 = vperm.slane %v192, %v251
  %v279 = vsel %vm253, %v278, %v277
  %v280 = vperm.slane %v193, %v255
  %v281 = vsel %vm257, %v280, %v279
  %v282 = vperm.slane %v194, %v259
  %v283 = vsel %vm261, %v282, %v281
  %v284 = vperm.slane %v195, %v249
  %v285 = vperm.slane %v196, %v251
  %v286 = vsel %vm253, %v285, %v284
  %v287 = vperm.slane %v197, %v255
  %v288 = vsel %vm257, %v287, %v286
  %v289 = vperm.slane %v198, %v259
  %v290 = vsel %vm261, %v289, %v288
  %v291 = vperm.slane %v199, %v249
  %v292 = vperm.slane %v200, %v251
  %v293 = vsel %vm253, %v292, %v291
  %v294 = vperm.slane %v201, %v255
  %v295 = vsel %vm257, %v294, %v293
  %v296 = vperm.slane %v202, %v259
  %v297 = vsel %vm261, %v296, %v295
  %v298 = vperm.slane %v203, %v249
  %v299 = vperm.slane %v204, %v251
  %v300 = vsel %vm253, %v299, %v298
  %v301 = vperm.slane %v205, %v255
  %v302 = vsel %vm257, %v301, %v300
  %v303 = vperm.slane %v206, %v259
  %v304 = vsel %vm261, %v303, %v302
  %v305 = vperm.slane %v207, %v249
  %v306 = vperm.slane %v208, %v251
  %v307 = vsel %vm253, %v306, %v305
  %v308 = vperm.slane %v209, %v255
  %v309 = vsel %vm257, %v308, %v307
  %v310 = vperm.slane %v210, %v259
  %v311 = vsel %vm261, %v310, %v309
  %vm312 = vcmask 1041409
  %v313 = vsel %vm312, %v269, %v262
  %vm314 = vcmask 1042434
  %v315 = vsel %vm314, %v276, %v313
  %vm316 = vcmask 1043459
  %v317 = vsel %vm316, %v283, %v315
  %vm318 = vcmask 1044484
  %v319 = vsel %vm318, %v290, %v317
  %vm320 = vcmask 1045509
  %v321 = vsel %vm320, %v297, %v319
  %vm322 = vcmask 1046534
  %v323 = vsel %vm322, %v304, %v321
  %vm324 = vcmask 1047559
  %v325 = vsel %vm324, %v311, %v323
  %vm326 = vcmask 261120
  %v327 = vsel %vm326, %v325, 0
  %329 = vmatpush.msra.mxu0 0.0
  %330 = vmatpush.msra.mxu0 0.0
  %331 = vmatpush.msra.mxu0 0.0
  %332 = vmatpush.msra.mxu0 0.0
  %333 = vmatpush.msra.mxu0 0.0
  %334 = vmatpush.msra.mxu0 0.0
  %335 = vmatpush.msra.mxu0 0.0
  %336 = vmatpush.msra.mxu0 0.0
  %337 = vmatpush.msra.mxu0 0.0
  %338 = vmatpush.msra.mxu0 0.0
  %339 = vmatpush.msra.mxu0 0.0
  %340 = vmatpush.msra.mxu0 0.0
  %341 = vmatpush.msra.mxu0 %v215
  %342 = vmatpush.msra.mxu0 %v214
  %343 = vmatpush.msra.mxu0 %v213
  %344 = vmatpush.msra.mxu0 %v212
  %345 = vmatmul.f32.gmra.mxu0 %v327
  %v346 = vpop.f32.mrf.mxu0
  %v347 = vadd.f32 0.0, %v346
  %348 = vdwg.mxu0
  %v349 = vadd.f32 %v211, %v347
  %350 = vst [vmem:[#allocation2] sm:$0xff] %v349
  // Predicated region
  $region18: #{covid_head_forward.1} parent=0 // pred_check
    %p351 = pneg %p14
  $region19: #{covid_head_forward.1} parent=0 // pred_check_branch
    %353 = sbr.rel (%p351) target = $region21
  $region20: #{covid_head_forward.1} parent=0 // pred_region
    %v354 = vld [vmem:[#allocation2] sm:$0xff]
    %v355 = vld [vmem:[%s2] sm:$0x1]
    %v357 = vperm.slane %v355, 0
    %v359 = vadd.f32 %v354, %v357
    %360 = vst [vmem:[%s3] sm:$0xff] %v359
  $region21: #{covid_head_forward.1} parent=0 // pred_fallthru
    _
  // Predicated region
  $region22: #{covid_head_forward.1} parent=0 // pred_check
    _
  $region23: #{covid_head_forward.1} parent=0 // pred_check_branch
    %362 = sbr.rel (0) target = $region25
  $region24: #{covid_head_forward.1} parent=0 // pred_region
    _
  $region25: #{covid_head_forward.1} parent=0 // pred_fallthru
    _
  // Predicated region
  $region26: #{covid_head_forward.1} parent=0 // pred_check
    _
  $region27: #{covid_head_forward.1} parent=0 // pred_check_branch
    %364 = sbr.rel (0) target = $region29
  $region28: #{covid_head_forward.1} parent=0 // pred_region
    _
  $region29: #{covid_head_forward.1} parent=0 // pred_fallthru
    _

</llo_original>
